<compile_context>
chip_gen: v6e
topology: v6e:2x2x1
jax: 0.10.0
libtpu: 0.0.40
codegen_flags: <defaults>
</compile_context>

<pallas_src>
import functools

import jax
import jax.numpy as jnp
from jax.experimental import pallas as pl
from jax.experimental.pallas import tpu as pltpu


def _round_up(x, m):
    return ((x + m - 1) // m) * m


def _make_controller_kernel(latents, transposed_out):
    """Kernel factory; `latents` (L) and the output layout are trace-time constants."""

    def kernel(lat_ref, rec_ref, w_ref, b_ref, o_ref):
        # lat_ref: (TB, L)   rec_ref: (TB, R)
        # w_ref:   (A, L+R)  -- torch nn.Linear layout (out_features, in_features)
        # b_ref:   (A, 1)
        # o_ref:   (A, TB) if transposed_out else (TB, A)
        nt = (((1,), (1,)), ((), ()))  # contract the shared K axis: a . b^T
        w_lat = w_ref[:, :latents]     # (A, L) static ref slice -> free view
        w_rec = w_ref[:, latents:]     # (A, R)
        logits_t = (
            jax.lax.dot_general(w_lat, lat_ref[...], nt,
                                preferred_element_type=jnp.float32)
            + jax.lax.dot_general(w_rec, rec_ref[...], nt,
                                  preferred_element_type=jnp.float32)
            + b_ref[...]
        )  # (A, TB): batch on the 128-wide lane axis -> dense vregs below.

        # Numerically stable softmax over actions (sublane axis), exact divide.
        m = jnp.max(logits_t, axis=0, keepdims=True)   # (1, TB)
        e = jnp.exp(logits_t - m)
        s = jnp.sum(e, axis=0, keepdims=True)          # (1, TB)
        probs_t = e / s                                # exact: rows sum to 1 to f32 rounding

        if transposed_out:
            o_ref[...] = probs_t.astype(o_ref.dtype)       # dense full-width vst
        else:
            o_ref[...] = probs_t.T.astype(o_ref.dtype)     # tiny (A, TB) vxpose, no extra launch

    return kernel


def controller_forward(latent, recurrent, weight, bias, *, block_b=1024,
                       transposed_output=False):
    """Pallas equivalent of Controller_Module.forward(latent, recurrent).

    latent:    (B, L) f32
    recurrent: (B, R) f32
    weight:    (A, L + R) f32  -- torch nn.Linear layout (out_features, in_features)
    bias:      (A,)   f32
    returns:   (B, A) f32 softmax over actions, or (A, B) if transposed_output=True.
    """
    B, L = latent.shape
    Br, R = recurrent.shape
    A, K = weight.shape
    assert Br == B, "latent / recurrent batch mismatch"
    assert K == L + R, "weight must be (actions, latents + recurrents), torch layout"
    assert bias.shape == (A,), "bias must be (actions,)"

    b2d = bias.reshape(A, 1)  # broadcasts over the lane (batch) axis in-kernel

    # Batch-tile selection.  VMEM is irrelevant at these sizes (~0.4 MiB
    # double-buffered at tb=1024); the tile only needs to amortize per-grid-step
    # overhead, and for larger B we want >= 2 tiles so both v7x TCs get work.
    if B <= 256 and B <= block_b:
        tb = B                                   # single tile: block == full dims
    else:
        tb = min(_round_up(block_b, 128),
                 max(128, _round_up(pl.cdiv(B, 2), 128)))  # 128-mult for lane-dense out block
        if tb >= B:
            tb = B
    grid = (pl.cdiv(B, tb),)                     # ragged last tile; no HBM pad copies

    if transposed_output:
        out_shape = jax.ShapeDtypeStruct((A, B), jnp.float32)
        out_spec = pl.BlockSpec((A, tb), lambda i: (0, i))   # lane-dense store
    else:
        out_shape = jax.ShapeDtypeStruct((B, A), jnp.float32)
        out_spec = pl.BlockSpec((tb, A), lambda i: (i, 0))   # module-contract layout

    cost = pl.CostEstimate(
        flops=2 * B * K * A,
        transcendentals=B * A,                       # exp in softmax
        bytes_accessed=4 * (B * K + A * K + A + B * A),
    )

    return pl.pallas_call(
        _make_controller_kernel(L, transposed_output),
        out_shape=out_shape,
        grid_spec=pltpu.PrefetchScalarGridSpec(
            num_scalar_prefetch=0,
            grid=grid,
            in_specs=[
                pl.BlockSpec((tb, L), lambda i: (i, 0)),   # latent tile
                pl.BlockSpec((tb, R), lambda i: (i, 0)),   # recurrent tile
                pl.BlockSpec((A, K), lambda i: (0, 0)),    # fused weight, VMEM-resident
                pl.BlockSpec((A, 1), lambda i: (0, 0)),    # bias
            ],
            out_specs=out_spec,
        ),
        compiler_params=pltpu.CompilerParams(
            # Batch tiles are independent; on v7x this lets the 2 TCs split the
            # grid (swap in pltpu.CORE_PARALLEL there if desired).
            dimension_semantics=(pltpu.PARALLEL,),
        ),
        cost_estimate=cost,
    )(latent, recurrent, weight, b2d)


if __name__ == "__main__":
    # Shapes consistent with Controller(latents, recurrents, actions); a batch
    # of environments.  Small enough to run instantly, big enough to exercise
    # the multi-tile / ragged-tail path in the extra check below.
    LATENTS, RECURRENTS, ACTIONS, BATCH = 32, 16, 8, 200

    key = jax.random.PRNGKey(0)
    k_lat, k_rec, k_w, k_b = jax.random.split(key, 4)

    latent = jax.random.normal(k_lat, (BATCH, LATENTS), dtype=jnp.float32)
    recurrent = jax.random.normal(k_rec, (BATCH, RECURRENTS), dtype=jnp.float32)

    # torch nn.Linear default init range; weight kept in torch (out, in) layout.
    fan_in = LATENTS + RECURRENTS
    bound = 1.0 / (fan_in ** 0.5)
    weight = jax.random.uniform(
        k_w, (ACTIONS, fan_in), minval=-bound, maxval=bound, dtype=jnp.float32
    )
    bias = jax.random.uniform(
        k_b, (ACTIONS,), minval=-bound, maxval=bound, dtype=jnp.float32
    )

    # Pure-JAX reference (matches the PyTorch module exactly).
    ref = jax.nn.softmax(
        jnp.concatenate([latent, recurrent], axis=-1) @ weight.T + bias, axis=-1
    )

    # Default (perf) configuration: single tile at this batch size.
    fwd = jax.jit(controller_forward)
    out = jax.block_until_ready(fwd(latent, recurrent, weight, bias))
    assert out.shape == (BATCH, ACTIONS)
    assert jnp.allclose(out, ref, atol=1e-4, rtol=1e-4), float(jnp.max(jnp.abs(out - ref)))
    assert jnp.allclose(jnp.sum(out, axis=-1), 1.0, atol=1e-4)

    # Correctness check of the multi-tile / ragged-last-tile path (grid=(2,),
    # tail of 72 rows).  Small block used only to exercise that path here; the
    # performance default stays block_b=1024.
    fwd_mt = jax.jit(functools.partial(controller_forward, block_b=128))
    out_mt = jax.block_until_ready(fwd_mt(latent, recurrent, weight, bias))
    assert jnp.allclose(out_mt, ref, atol=1e-4, rtol=1e-4)

    # Lane-dense (A, B) output path for consumers that accept the transposed
    # layout (no in-kernel transpose, no wrapper transpose).
    fwd_t = jax.jit(functools.partial(controller_forward, transposed_output=True))
    out_t = jax.block_until_ready(fwd_t(latent, recurrent, weight, bias))
    assert out_t.shape == (ACTIONS, BATCH)
    assert jnp.allclose(out_t, ref.T, atol=1e-4, rtol=1e-4)

    print("KERNEL_OK")
</pallas_src>

<mosaic_0001>
module attributes {stable_mosaic.version = 11 : i64} {
  func.func @kernel(%arg0: i32, %arg1: memref<200x32xf32, #tpu.memory_space<vmem>>, %arg2: memref<200x16xf32, #tpu.memory_space<vmem>>, %arg3: memref<8x48xf32, #tpu.memory_space<vmem>>, %arg4: memref<8x1xf32, #tpu.memory_space<vmem>>, %arg5: memref<200x8xf32, #tpu.memory_space<vmem>>) attributes {dimension_semantics = [#tpu.dimension_semantics<parallel>], iteration_bounds = array<i64: 1>, scalar_prefetch = 0 : i64, scratch_operands = 0 : i64, tpu.core_type = #tpu.core_type<tc>, window_params = [{transform_indices = @transform_0, window_bounds = array<i64: 200, 32>}, {transform_indices = @transform_1, window_bounds = array<i64: 200, 16>}, {pipeline_mode = #tpu.pipeline_mode<synchronous>, transform_indices = @transform_2, window_bounds = array<i64: 8, 48>}, {pipeline_mode = #tpu.pipeline_mode<synchronous>, transform_indices = @transform_3, window_bounds = array<i64: 8, 1>}, {transform_indices = @transform_4, window_bounds = array<i64: 200, 8>}]} {
    %c0 = arith.constant 0 : index
    %c0_0 = arith.constant 0 : index
    %0 = vector.load %arg3[%c0, %c0_0] : memref<8x48xf32, #tpu.memory_space<vmem>>, vector<8x32xf32>
    %c0_1 = arith.constant 0 : index
    %c32 = arith.constant 32 : index
    %1 = vector.load %arg3[%c0_1, %c32] : memref<8x48xf32, #tpu.memory_space<vmem>>, vector<8x16xf32>
    %c0_2 = arith.constant 0 : index
    %c0_3 = arith.constant 0 : index
    %2 = vector.load %arg1[%c0_2, %c0_3] : memref<200x32xf32, #tpu.memory_space<vmem>>, vector<200x32xf32>
    %cst = arith.constant dense<0.000000e+00> : vector<8x200xf32>
    %3 = tpu.matmul %0, %2, %cst {dimension_numbers = #tpu.dot_dimension_numbers<[1], [1], [0], [0], [0, 0, 1, 0], [], []>} : vector<8x32xf32>, vector<200x32xf32>, vector<8x200xf32> -> vector<8x200xf32>
    %c0_4 = arith.constant 0 : index
    %c0_5 = arith.constant 0 : index
    %4 = vector.load %arg2[%c0_4, %c0_5] : memref<200x16xf32, #tpu.memory_space<vmem>>, vector<200x16xf32>
    %cst_6 = arith.constant dense<0.000000e+00> : vector<8x200xf32>
    %5 = tpu.matmul %1, %4, %cst_6 {dimension_numbers = #tpu.dot_dimension_numbers<[1], [1], [0], [0], [0, 0, 1, 0], [], []>} : vector<8x16xf32>, vector<200x16xf32>, vector<8x200xf32> -> vector<8x200xf32>
    %6 = arith.addf %3, %5 : vector<8x200xf32>
    %c0_7 = arith.constant 0 : index
    %c0_8 = arith.constant 0 : index
    %7 = vector.load %arg4[%c0_7, %c0_8] : memref<8x1xf32, #tpu.memory_space<vmem>>, vector<8x1xf32>
    %8 = vector.broadcast %7 : vector<8x1xf32> to vector<8x200xf32>
    %9 = arith.addf %6, %8 : vector<8x200xf32>
    %cst_9 = arith.constant dense<0xFF800000> : vector<200xf32>
    %10 = vector.multi_reduction <maximumf>, %9, %cst_9 [0] : vector<8x200xf32> to vector<200xf32>
    %11 = vector.shape_cast %10 : vector<200xf32> to vector<1x200xf32>
    %12 = vector.broadcast %11 : vector<1x200xf32> to vector<8x200xf32>
    %13 = arith.subf %9, %12 : vector<8x200xf32>
    %14 = math.exp %13 : vector<8x200xf32>
    %cst_10 = arith.constant dense<0.000000e+00> : vector<200xf32>
    %15 = vector.multi_reduction <add>, %14, %cst_10 [0] : vector<8x200xf32> to vector<200xf32>
    %16 = vector.shape_cast %15 : vector<200xf32> to vector<1x200xf32>
    %17 = vector.broadcast %16 : vector<1x200xf32> to vector<8x200xf32>
    %18 = arith.divf %14, %17 : vector<8x200xf32>
    %19 = tpu.transpose %18, [1, 0] : vector<8x200xf32> -> vector<200x8xf32>
    %c0_11 = arith.constant 0 : index
    %c0_12 = arith.constant 0 : index
    %20 = vector.load %arg5[%c0_11, %c0_12] : memref<200x8xf32, #tpu.memory_space<vmem>>, vector<200x8xf32>
    tpu.vector_store %arg5[%c0_11, %c0_12], %19 {strides = array<i32>} : memref<200x8xf32, #tpu.memory_space<vmem>>, vector<200x8xf32>,
    return
  }
  func.func @transform_0(%arg0: i32) -> (i32, i32) {
    %c0_i32 = arith.constant 0 : i32
    %c0_i32_0 = arith.constant 0 : i32
    return %arg0, %c0_i32 : i32, i32
  }
  func.func @transform_1(%arg0: i32) -> (i32, i32) {
    %c0_i32 = arith.constant 0 : i32
    %c0_i32_0 = arith.constant 0 : i32
    return %arg0, %c0_i32 : i32, i32
  }
  func.func @transform_2(%arg0: i32) -> (i32, i32) {
    %c0_i32 = arith.constant 0 : i32
    %c0_i32_0 = arith.constant 0 : i32
    %c0_i32_1 = arith.constant 0 : i32
    return %c0_i32, %c0_i32_0 : i32, i32
  }
  func.func @transform_3(%arg0: i32) -> (i32, i32) {
    %c0_i32 = arith.constant 0 : i32
    %c0_i32_0 = arith.constant 0 : i32
    %c0_i32_1 = arith.constant 0 : i32
    return %c0_i32, %c0_i32_0 : i32, i32
  }
  func.func @transform_4(%arg0: i32) -> (i32, i32) {
    %c0_i32 = arith.constant 0 : i32
    %c0_i32_0 = arith.constant 0 : i32
    return %arg0, %c0_i32 : i32, i32
  }
}

</mosaic_0001>

<llo_original>
// kernel: controller_forward.1
$region0: #{controller_forward.1}
  #allocation0 [shape = 'u32[]', space=smem, size = 0x4, offset = 0x4, fixed_abs, tag = 'smem constant byte address 0x4 - core index']
  #allocation1 [shape = 'u32[144,128]{1,0:T(1,128)}', space=vmem, size = 0x12000, scoped, tag = 'internal scratch']
  %s0 = inlined_call_operand.vmem [shape: f32[200,32], index: 0, kind: input, shape index: {}]
  %s1 = inlined_call_operand.vmem [shape: f32[200,16], index: 1, kind: input, shape index: {}]
  %s2 = inlined_call_operand.vmem [shape: f32[8,48], index: 2, kind: input, shape index: {}]
  %s3 = inlined_call_operand.vmem [shape: f32[8,1], index: 3, kind: input, shape index: {}]
  %s4 = inlined_call_operand.vmem [shape: f32[200,8], index: 4, kind: output, shape index: {}]
  %s5 = sld [smem:[#allocation0]]
  $region26: #{controller_forward.1} parent=0
    _
  %s7 = ssub.s32 1, %s5
  %s8 = scalar_select 0, %s7, %s5
  // Predicated region
  $region2: #{controller_forward.1} parent=0 // pred_check
    _
  $region3: #{controller_forward.1} parent=0 // pred_check_branch
    %10 = sbr.rel (0) target = $region5
  $region4: #{controller_forward.1} parent=0 // pred_region
    _
  $region5: #{controller_forward.1} parent=0 // pred_fallthru
    _
  // Predicated region
  $region6: #{controller_forward.1} parent=0 // pred_check
    _
  $region7: #{controller_forward.1} parent=0 // pred_check_branch
    %12 = sbr.rel (0) target = $region9
  $region8: #{controller_forward.1} parent=0 // pred_region
    _
  $region9: #{controller_forward.1} parent=0 // pred_fallthru
    _
  // Predicated region
  $region10: #{controller_forward.1} parent=0 // pred_check
    _
  $region11: #{controller_forward.1} parent=0 // pred_check_branch
    %14 = sbr.rel (0) target = $region13
  $region12: #{controller_forward.1} parent=0 // pred_region
    _
  $region13: #{controller_forward.1} parent=0 // pred_fallthru
    _
  // Predicated region
  $region14: #{controller_forward.1} parent=0 // pred_check
    _
  $region15: #{controller_forward.1} parent=0 // pred_check_branch
    %16 = sbr.rel (0) target = $region17
  $region16: #{controller_forward.1} parent=0 // pred_region
    _
  $region17: #{controller_forward.1} parent=0 // pred_fallthru
    _
  %v17 = vld [vmem:[%s2] sm:$0xff]
  %v18 = vld [vmem:[%s0] sm:$0xff]
  %v19 = vld [vmem:[%s0 + $0x8] sm:$0xff]
  %v20 = vld [vmem:[%s0 + $0x10] sm:$0xff]
  %v21 = vld [vmem:[%s0 + $0x18] sm:$0xff]
  %v22 = vld [vmem:[%s0 + $0x20] sm:$0xff]
  %v23 = vld [vmem:[%s0 + $0x28] sm:$0xff]
  %v24 = vld [vmem:[%s0 + $0x30] sm:$0xff]
  %v25 = vld [vmem:[%s0 + $0x38] sm:$0xff]
  %v26 = vld [vmem:[%s0 + $0x40] sm:$0xff]
  %v27 = vld [vmem:[%s0 + $0x48] sm:$0xff]
  %v28 = vld [vmem:[%s0 + $0x50] sm:$0xff]
  %v29 = vld [vmem:[%s0 + $0x58] sm:$0xff]
  %v30 = vld [vmem:[%s0 + $0x60] sm:$0xff]
  %v31 = vld [vmem:[%s0 + $0x68] sm:$0xff]
  %v32 = vld [vmem:[%s0 + $0x70] sm:$0xff]
  %v33 = vld [vmem:[%s0 + $0x78] sm:$0xff]
  %v34 = vld [vmem:[%s0 + $0x80] sm:$0xff]
  %v35 = vld [vmem:[%s0 + $0x88] sm:$0xff]
  %v36 = vld [vmem:[%s0 + $0x90] sm:$0xff]
  %v37 = vld [vmem:[%s0 + $0x98] sm:$0xff]
  %v38 = vld [vmem:[%s0 + $0xa0] sm:$0xff]
  %v39 = vld [vmem:[%s0 + $0xa8] sm:$0xff]
  %v40 = vld [vmem:[%s0 + $0xb0] sm:$0xff]
  %v41 = vld [vmem:[%s0 + $0xb8] sm:$0xff]
  %v42 = vld [vmem:[%s0 + $0xc0] sm:$0xff]
  %v43 = vld [vmem:[%s1] sm:$0xff]
  %v44 = vld [vmem:[%s1 + $0x8] sm:$0xff]
  %v45 = vld [vmem:[%s1 + $0x10] sm:$0xff]
  %v46 = vld [vmem:[%s1 + $0x18] sm:$0xff]
  %v47 = vld [vmem:[%s1 + $0x20] sm:$0xff]
  %v48 = vld [vmem:[%s1 + $0x28] sm:$0xff]
  %v49 = vld [vmem:[%s1 + $0x30] sm:$0xff]
  %v50 = vld [vmem:[%s1 + $0x38] sm:$0xff]
  %v51 = vld [vmem:[%s1 + $0x40] sm:$0xff]
  %v52 = vld [vmem:[%s1 + $0x48] sm:$0xff]
  %v53 = vld [vmem:[%s1 + $0x50] sm:$0xff]
  %v54 = vld [vmem:[%s1 + $0x58] sm:$0xff]
  %v55 = vld [vmem:[%s1 + $0x60] sm:$0xff]
  %v56 = vld [vmem:[%s1 + $0x68] sm:$0xff]
  %v57 = vld [vmem:[%s1 + $0x70] sm:$0xff]
  %v58 = vld [vmem:[%s1 + $0x78] sm:$0xff]
  %v59 = vld [vmem:[%s1 + $0x80] sm:$0xff]
  %v60 = vld [vmem:[%s1 + $0x88] sm:$0xff]
  %v61 = vld [vmem:[%s1 + $0x90] sm:$0xff]
  %v62 = vld [vmem:[%s1 + $0x98] sm:$0xff]
  %v63 = vld [vmem:[%s1 + $0xa0] sm:$0xff]
  %v64 = vld [vmem:[%s1 + $0xa8] sm:$0xff]
  %v65 = vld [vmem:[%s1 + $0xb0] sm:$0xff]
  %v66 = vld [vmem:[%s1 + $0xb8] sm:$0xff]
  %v67 = vld [vmem:[%s1 + $0xc0] sm:$0xff]
  %69 = vrot.lane.b32.xlu0 %v17, 96
  %v70 = vpop.permute.xlu0 %69
  %vm71 = vcmask 130048
  %v72 = vsel %vm71, %v70, 0
  %v75 = vsel %vm71, %v43, 0
  %v78 = vsel %vm71, %v44, 0
  %v81 = vsel %vm71, %v45, 0
  %v84 = vsel %vm71, %v46, 0
  %v87 = vsel %vm71, %v47, 0
  %v90 = vsel %vm71, %v48, 0
  %v93 = vsel %vm71, %v49, 0
  %v96 = vsel %vm71, %v50, 0
  %v99 = vsel %vm71, %v51, 0
  %v102 = vsel %vm71, %v52, 0
  %v105 = vsel %vm71, %v53, 0
  %v108 = vsel %vm71, %v54, 0
  %v111 = vsel %vm71, %v55, 0
  %v114 = vsel %vm71, %v56, 0
  %v117 = vsel %vm71, %v57, 0
  %v120 = vsel %vm71, %v58, 0
  %v123 = vsel %vm71, %v59, 0
  %v126 = vsel %vm71, %v60, 0
  %v129 = vsel %vm71, %v61, 0
  %v132 = vsel %vm71, %v62, 0
  %v135 = vsel %vm71, %v63, 0
  %v138 = vsel %vm71, %v64, 0
  %v141 = vsel %vm71, %v65, 0
  %v144 = vsel %vm71, %v66, 0
  %v147 = vsel %vm71, %v67, 0
  %149 = vmatprep.subr.mxu0 0.0
  %150 = vmatpush1.xpose.msra.mxu0 %v120
  %151 = vmatprep.subr.mxu0 0.0
  %152 = vmatpush1.xpose.msra.mxu0 %v117
  %153 = vmatprep.subr.mxu0 0.0
  %154 = vmatpush1.xpose.msra.mxu0 %v114
  %155 = vmatprep.subr.mxu0 0.0
  %156 = vmatpush1.xpose.msra.mxu0 %v111
  %157 = vmatprep.subr.mxu0 0.0
  %158 = vmatpush1.xpose.msra.mxu0 %v108
  %159 = vmatprep.subr.mxu0 0.0
  %160 = vmatpush1.xpose.msra.mxu0 %v105
  %161 = vmatprep.subr.mxu0 0.0
  %162 = vmatpush1.xpose.msra.mxu0 %v102
  %163 = vmatprep.subr.mxu0 0.0
  %164 = vmatpush1.xpose.msra.mxu0 %v99
  %165 = vmatprep.subr.mxu0 0.0
  %166 = vmatpush1.xpose.msra.mxu0 %v96
  %167 = vmatprep.subr.mxu0 0.0
  %168 = vmatpush1.xpose.msra.mxu0 %v93
  %169 = vmatprep.subr.mxu0 0.0
  %170 = vmatpush1.xpose.msra.mxu0 %v90
  %171 = vmatprep.subr.mxu0 0.0
  %172 = vmatpush1.xpose.msra.mxu0 %v87
  %173 = vmatprep.subr.mxu0 0.0
  %174 = vmatpush1.xpose.msra.mxu0 %v84
  %175 = vmatprep.subr.mxu0 0.0
  %176 = vmatpush1.xpose.msra.mxu0 %v81
  %177 = vmatprep.subr.mxu0 0.0
  %178 = vmatpush1.xpose.msra.mxu0 %v78
  %179 = vmatprep.subr.mxu0 0.0
  %180 = vmatpush1.xpose.msra.mxu0 %v75
  %181 = vmatprep.subr.mxu0 0.0
  %182 = vmatpush2.xpose.msra.mxu0 0.0
  %183 = vmatprep.subr.mxu0 0.0
  %184 = vmatpush2.xpose.msra.mxu0 0.0
  %185 = vmatprep.subr.mxu0 0.0
  %186 = vmatpush2.xpose.msra.mxu0 0.0
  %187 = vmatprep.subr.mxu0 0.0
  %188 = vmatpush2.xpose.msra.mxu0 0.0
  %189 = vmatprep.subr.mxu0 0.0
  %190 = vmatpush2.xpose.msra.mxu0 0.0
  %191 = vmatprep.subr.mxu0 0.0
  %192 = vmatpush2.xpose.msra.mxu0 0.0
  %193 = vmatprep.subr.mxu0 0.0
  %194 = vmatpush2.xpose.msra.mxu0 0.0
  %195 = vmatprep.subr.mxu0 0.0
  %196 = vmatpush2.xpose.msra.mxu0 %v147
  %197 = vmatprep.subr.mxu0 0.0
  %198 = vmatpush2.xpose.msra.mxu0 %v144
  %199 = vmatprep.subr.mxu0 0.0
  %200 = vmatpush2.xpose.msra.mxu0 %v141
  %201 = vmatprep.subr.mxu0 0.0
  %202 = vmatpush2.xpose.msra.mxu0 %v138
  %203 = vmatprep.subr.mxu0 0.0
  %204 = vmatpush2.xpose.msra.mxu0 %v135
  %205 = vmatprep.subr.mxu0 0.0
  %206 = vmatpush2.xpose.msra.mxu0 %v132
  %207 = vmatprep.subr.mxu0 0.0
  %208 = vmatpush2.xpose.msra.mxu0 %v129
  %209 = vmatprep.subr.mxu0 0.0
  %210 = vmatpush2.xpose.msra.mxu0 %v126
  %211 = vmatprep.subr.mxu0 0.0
  %212 = vmatpush2.xpose.msra.mxu0 %v123
  %213 = vmatprep.mubr.f32.mxu0 0.0
  %214 = vmatmul.mubr.f32.gmra.mxu0 %v72
  %v215 = vpop.f32.mrf.mxu0
  %v216 = vadd.f32 0.0, %v215
  %v217 = vpop.f32.mrf.mxu0
  %v218 = vadd.f32 0.0, %v217
  %219 = vdwg.mxu0
  %vm220 = vcmask 261120
  %v221 = vsel %vm220, %v17, 0
  %v224 = vsel %vm220, %v18, 0
  %v227 = vsel %vm220, %v19, 0
  %v230 = vsel %vm220, %v20, 0
  %v233 = vsel %vm220, %v21, 0
  %v236 = vsel %vm220, %v22, 0
  %v239 = vsel %vm220, %v23, 0
  %v242 = vsel %vm220, %v24, 0
  %v245 = vsel %vm220, %v25, 0
  %v248 = vsel %vm220, %v26, 0
  %v251 = vsel %vm220, %v27, 0
  %v254 = vsel %vm220, %v28, 0
  %v257 = vsel %vm220, %v29, 0
  %v260 = vsel %vm220, %v30, 0
  %v263 = vsel %vm220, %v31, 0
  %v266 = vsel %vm220, %v32, 0
  %v269 = vsel %vm220, %v33, 0
  %v272 = vsel %vm220, %v34, 0
  %v275 = vsel %vm220, %v35, 0
  %v278 = vsel %vm220, %v36, 0
  %v281 = vsel %vm220, %v37, 0
  %v284 = vsel %vm220, %v38, 0
  %v287 = vsel %vm220, %v39, 0
  %v290 = vsel %vm220, %v40, 0
  %v293 = vsel %vm220, %v41, 0
  %v296 = vsel %vm220, %v42, 0
  %298 = vmatprep.subr.mxu0 0.0
  %299 = vmatpush1.xpose.msra.mxu0 %v269
  %300 = vmatprep.subr.mxu0 0.0
  %301 = vmatpush1.xpose.msra.mxu0 %v266
  %302 = vmatprep.subr.mxu0 0.0
  %303 = vmatpush1.xpose.msra.mxu0 %v263
  %304 = vmatprep.subr.mxu0 0.0
  %305 = vmatpush1.xpose.msra.mxu0 %v260
  %306 = vmatprep.subr.mxu0 0.0
  %307 = vmatpush1.xpose.msra.mxu0 %v257
  %308 = vmatprep.subr.mxu0 0.0
  %309 = vmatpush1.xpose.msra.mxu0 %v254
  %310 = vmatprep.subr.mxu0 0.0
  %311 = vmatpush1.xpose.msra.mxu0 %v251
  %312 = vmatprep.subr.mxu0 0.0
  %313 = vmatpush1.xpose.msra.mxu0 %v248
  %314 = vmatprep.subr.mxu0 0.0
  %315 = vmatpush1.xpose.msra.mxu0 %v245
  %316 = vmatprep.subr.mxu0 0.0
  %317 = vmatpush1.xpose.msra.mxu0 %v242
  %318 = vmatprep.subr.mxu0 0.0
  %319 = vmatpush1.xpose.msra.mxu0 %v239
  %320 = vmatprep.subr.mxu0 0.0
  %321 = vmatpush1.xpose.msra.mxu0 %v236
  %322 = vmatprep.subr.mxu0 0.0
  %323 = vmatpush1.xpose.msra.mxu0 %v233
  %324 = vmatprep.subr.mxu0 0.0
  %325 = vmatpush1.xpose.msra.mxu0 %v230
  %326 = vmatprep.subr.mxu0 0.0
  %327 = vmatpush1.xpose.msra.mxu0 %v227
  %328 = vmatprep.subr.mxu0 0.0
  %329 = vmatpush1.xpose.msra.mxu0 %v224
  %330 = vmatprep.subr.mxu0 0.0
  %331 = vmatpush2.xpose.msra.mxu0 0.0
  %332 = vmatprep.subr.mxu0 0.0
  %333 = vmatpush2.xpose.msra.mxu0 0.0
  %334 = vmatprep.subr.mxu0 0.0
  %335 = vmatpush2.xpose.msra.mxu0 0.0
  %336 = vmatprep.subr.mxu0 0.0
  %337 = vmatpush2.xpose.msra.mxu0 0.0
  %338 = vmatprep.subr.mxu0 0.0
  %339 = vmatpush2.xpose.msra.mxu0 0.0
  %340 = vmatprep.subr.mxu0 0.0
  %341 = vmatpush2.xpose.msra.mxu0 0.0
  %342 = vmatprep.subr.mxu0 0.0
  %343 = vmatpush2.xpose.msra.mxu0 0.0
  %344 = vmatprep.subr.mxu0 0.0
  %345 = vmatpush2.xpose.msra.mxu0 %v296
  %346 = vmatprep.subr.mxu0 0.0
  %347 = vmatpush2.xpose.msra.mxu0 %v293
  %348 = vmatprep.subr.mxu0 0.0
  %349 = vmatpush2.xpose.msra.mxu0 %v290
  %350 = vmatprep.subr.mxu0 0.0
  %351 = vmatpush2.xpose.msra.mxu0 %v287
  %352 = vmatprep.subr.mxu0 0.0
  %353 = vmatpush2.xpose.msra.mxu0 %v284
  %354 = vmatprep.subr.mxu0 0.0
  %355 = vmatpush2.xpose.msra.mxu0 %v281
  %356 = vmatprep.subr.mxu0 0.0
  %357 = vmatpush2.xpose.msra.mxu0 %v278
  %358 = vmatprep.subr.mxu0 0.0
  %359 = vmatpush2.xpose.msra.mxu0 %v275
  %360 = vmatprep.subr.mxu0 0.0
  %361 = vmatpush2.xpose.msra.mxu0 %v272
  %362 = vmatprep.mubr.f32.mxu0 0.0
  %363 = vmatmul.mubr.f32.gmra.mxu0 %v221
  %v364 = vpop.f32.mrf.mxu0
  %v365 = vadd.f32 %v216, %v364
  %v366 = vpop.f32.mrf.mxu0
  %v367 = vadd.f32 %v218, %v366
  %368 = vdwg.mxu0
  %v369 = vld [vmem:[%s3] sm:$0xff]
  %371 = vset.pattern.permute.xlu0 0
  %372 = vperm.xlu0 %371, %v369
  %v373 = vpop.permute.xlu0 %372
  %v375 = vadd.f32 %v365, %v373
  %v376 = vadd.f32 %v367, %v373
  %v377 = vrot.slane %v375, 4
  %v378 = vmax.f32 %v375, %v377
  %v379 = vrot.slane %v378, 2
  %v380 = vmax.f32 %v378, %v379
  %v381 = vrot.slane %v380, 1
  %v382 = vmax.f32 %v380, %v381
  %vm383 = vcmask 588800
  %v384 = vsel %vm383, %v376, -inf
  %v385 = vrot.slane %v384, 4
  %v386 = vmax.f32 %v384, %v385
  %v387 = vrot.slane %v386, 2
  %v388 = vmax.f32 %v386, %v387
  %v389 = vrot.slane %v388, 1
  %v390 = vmax.f32 %v388, %v389
  %v391 = vsub.f32 %v375, %v382
  %v392 = vsub.f32 %v376, %v390
  %v393 = vmul.f32 %v391, 1.442695
  %v394 = vpow.pop %v393
  %v395 = vmul.f32 %v392, 1.442695
  %v396 = vpow.pop %v395
  %v397 = vrot.slane %v394, 4
  %v398 = vadd.f32 %v394, %v397
  %v399 = vrot.slane %v398, 2
  %v400 = vadd.f32 %v398, %v399
  %v401 = vrot.slane %v400, 1
  %v402 = vadd.f32 %v400, %v401
  %v403 = vsel %vm383, %v396, 0.0
  %v404 = vrot.slane %v403, 4
  %v405 = vadd.f32 %v403, %v404
  %v406 = vrot.slane %v405, 2
  %v407 = vadd.f32 %v405, %v406
  %v408 = vrot.slane %v407, 1
  %v409 = vadd.f32 %v407, %v408
  %v410 = vrcp.pop %v402
  %v411 = vmul.f32 %v394, %v410
  %v412 = vrcp.pop %v409
  %v413 = vmul.f32 %v396, %v412
  %414 = vxpose.xlu0.b32.start [1/16] %v411, 128
  %415 = vxpose.xlu0.b32.cont [2/16] 0.0, 128
  %416 = vxpose.xlu0.b32.cont [3/16] 0.0, 128
  %417 = vxpose.xlu0.b32.cont [4/16] 0.0, 128
  %418 = vxpose.xlu0.b32.cont [5/16] 0.0, 128
  %419 = vxpose.xlu0.b32.cont [6/16] 0.0, 128
  %420 = vxpose.xlu0.b32.cont [7/16] 0.0, 128
  %421 = vxpose.xlu0.b32.cont [8/16] 0.0, 128
  %422 = vxpose.xlu0.b32.cont [9/16] 0.0, 128
  %423 = vxpose.xlu0.b32.cont [10/16] 0.0, 128
  %424 = vxpose.xlu0.b32.cont [11/16] 0.0, 128
  %425 = vxpose.xlu0.b32.cont [12/16] 0.0, 128
  %426 = vxpose.xlu0.b32.cont [13/16] 0.0, 128
  %427 = vxpose.xlu0.b32.cont [14/16] 0.0, 128
  %428 = vxpose.xlu0.b32.cont [15/16] 0.0, 128
  %429 = vxpose.xlu0.b32.end [16/16] 0.0, 128
  %v430 = vpop.trf.xlu0
  %v431 = vpop.trf.xlu0
  %v432 = vpop.trf.xlu0
  %v433 = vpop.trf.xlu0
  %v434 = vpop.trf.xlu0
  %v435 = vpop.trf.xlu0
  %v436 = vpop.trf.xlu0
  %v437 = vpop.trf.xlu0
  %v438 = vpop.trf.xlu0
  %v439 = vpop.trf.xlu0
  %v440 = vpop.trf.xlu0
  %v441 = vpop.trf.xlu0
  %v442 = vpop.trf.xlu0
  %v443 = vpop.trf.xlu0
  %v444 = vpop.trf.xlu0
  %v445 = vpop.trf.xlu0
  %446 = vxpose.xlu0.b32.start [1/16] %v413, 128
  %447 = vxpose.xlu0.b32.cont [2/16] 0.0, 128
  %448 = vxpose.xlu0.b32.cont [3/16] 0.0, 128
  %449 = vxpose.xlu0.b32.cont [4/16] 0.0, 128
  %450 = vxpose.xlu0.b32.cont [5/16] 0.0, 128
  %451 = vxpose.xlu0.b32.cont [6/16] 0.0, 128
  %452 = vxpose.xlu0.b32.cont [7/16] 0.0, 128
  %453 = vxpose.xlu0.b32.cont [8/16] 0.0, 128
  %454 = vxpose.xlu0.b32.cont [9/16] 0.0, 128
  %455 = vxpose.xlu0.b32.cont [10/16] 0.0, 128
  %456 = vxpose.xlu0.b32.cont [11/16] 0.0, 128
  %457 = vxpose.xlu0.b32.cont [12/16] 0.0, 128
  %458 = vxpose.xlu0.b32.cont [13/16] 0.0, 128
  %459 = vxpose.xlu0.b32.cont [14/16] 0.0, 128
  %460 = vxpose.xlu0.b32.cont [15/16] 0.0, 128
  %461 = vxpose.xlu0.b32.end [16/16] 0.0, 128
  %v462 = vpop.trf.xlu0
  %v463 = vpop.trf.xlu0
  %v464 = vpop.trf.xlu0
  %v465 = vpop.trf.xlu0
  %v466 = vpop.trf.xlu0
  %v467 = vpop.trf.xlu0
  %v468 = vpop.trf.xlu0
  %v469 = vpop.trf.xlu0
  %v470 = vpop.trf.xlu0
  %v471 = vpop.trf.xlu0
  %v472 = vpop.trf.xlu0
  %v473 = vpop.trf.xlu0
  %v474 = vpop.trf.xlu0
  %v475 = vpop.trf.xlu0
  %v476 = vpop.trf.xlu0
  %v477 = vpop.trf.xlu0
  %vm478 = vcmask 64512
  %479 = vst.msk [vmem:[%s4] sm:$0xff] %vm478, %v430
  %480 = vst.msk [vmem:[%s4 + $0x8] sm:$0xff] %vm478, %v431
  %481 = vst.msk [vmem:[%s4 + $0x10] sm:$0xff] %vm478, %v432
  %482 = vst.msk [vmem:[%s4 + $0x18] sm:$0xff] %vm478, %v433
  %483 = vst.msk [vmem:[%s4 + $0x20] sm:$0xff] %vm478, %v434
  %484 = vst.msk [vmem:[%s4 + $0x28] sm:$0xff] %vm478, %v435
  %485 = vst.msk [vmem:[%s4 + $0x30] sm:$0xff] %vm478, %v436
  %486 = vst.msk [vmem:[%s4 + $0x38] sm:$0xff] %vm478, %v437
  %487 = vst.msk [vmem:[%s4 + $0x40] sm:$0xff] %vm478, %v438
  %488 = vst.msk [vmem:[%s4 + $0x48] sm:$0xff] %vm478, %v439
  %489 = vst.msk [vmem:[%s4 + $0x50] sm:$0xff] %vm478, %v440
  %490 = vst.msk [vmem:[%s4 + $0x58] sm:$0xff] %vm478, %v441
  %491 = vst.msk [vmem:[%s4 + $0x60] sm:$0xff] %vm478, %v442
  %492 = vst.msk [vmem:[%s4 + $0x68] sm:$0xff] %vm478, %v443
  %493 = vst.msk [vmem:[%s4 + $0x70] sm:$0xff] %vm478, %v444
  %494 = vst.msk [vmem:[%s4 + $0x78] sm:$0xff] %vm478, %v445
  %495 = vst.msk [vmem:[%s4 + $0x80] sm:$0xff] %vm478, %v462
  %496 = vst.msk [vmem:[%s4 + $0x88] sm:$0xff] %vm478, %v463
  %497 = vst.msk [vmem:[%s4 + $0x90] sm:$0xff] %vm478, %v464
  %498 = vst.msk [vmem:[%s4 + $0x98] sm:$0xff] %vm478, %v465
  %499 = vst.msk [vmem:[%s4 + $0xa0] sm:$0xff] %vm478, %v466
  %500 = vst.msk [vmem:[%s4 + $0xa8] sm:$0xff] %vm478, %v467
  %501 = vst.msk [vmem:[%s4 + $0xb0] sm:$0xff] %vm478, %v468
  %502 = vst.msk [vmem:[%s4 + $0xb8] sm:$0xff] %vm478, %v469
  %503 = vst.msk [vmem:[%s4 + $0xc0] sm:$0xff] %vm478, %v470
  // Predicated region
  $region18: #{controller_forward.1} parent=0 // pred_check
    _
  $region19: #{controller_forward.1} parent=0 // pred_check_branch
    %505 = sbr.rel (0) target = $region21
  $region20: #{controller_forward.1} parent=0 // pred_region
    _
  $region21: #{controller_forward.1} parent=0 // pred_fallthru
    _
  // Predicated region
  $region22: #{controller_forward.1} parent=0 // pred_check
    _
  $region23: #{controller_forward.1} parent=0 // pred_check_branch
    %507 = sbr.rel (0) target = $region25
  $region24: #{controller_forward.1} parent=0 // pred_region
    _
  $region25: #{controller_forward.1} parent=0 // pred_fallthru
    _

</llo_original>
